<compile_context>
chip_gen: v5e
topology: v5e:2x2
jax: 0.10.0
libtpu: 0.0.40
codegen_flags: <defaults>
</compile_context>

<pallas_src>
import jax
import jax.numpy as jnp
from jax import lax
from jax.experimental import pallas as pl
from jax.experimental.pallas import tpu as pltpu

LANES = 128        # vreg lane width
CHUNK = 32         # sublane rows per inner-loop chunk (4 f32 vregs per operand)
N_IN = 2
N_HIDDEN = 8
N_PARAMS = N_IN * N_HIDDEN + N_HIDDEN + N_HIDDEN + 1   # 33


def _round_up(a, b):
    return ((a + b - 1) // b) * b


def mlp_kernel(params_ref, x_ref, o_ref):
    # params_ref : (33,)       SMEM  -- [w1 (2*8 row-major), b1 (8), w2 (8), b2 (1)]
    # x_ref      : (2, S, 128) VMEM  -- batch dense on sublanes x lanes
    # o_ref      : (S, 128)    VMEM  -- lane+sublane-dense output
    s_rows = o_ref.shape[0]
    n_chunks = s_rows // CHUNK        # static

    x0_ref = x_ref.at[0]              # (S, 128) ref views; zero runtime cost
    x1_ref = x_ref.at[1]

    def chunk_body(c, carry):
        r0 = pl.multiple_of(c * CHUNK, CHUNK)
        x0 = x0_ref[pl.ds(r0, CHUNK), :]            # (CHUNK, 128)
        x1 = x1_ref[pl.ds(r0, CHUNK), :]
        acc = jnp.zeros_like(x0)
        for j in range(N_HIDDEN):                   # statically unrolled, VPU only
            h = jnp.maximum(
                params_ref[j] * x0
                + params_ref[N_HIDDEN + j] * x1
                + params_ref[2 * N_HIDDEN + j],
                0.0,
            )
            acc = acc + params_ref[3 * N_HIDDEN + j] * h
        y = acc + params_ref[4 * N_HIDDEN]
        # sigmoid(y) = 1 / (1 + exp(-y)); exp + approx reciprocal -> EUP slot.
        o_ref[pl.ds(r0, CHUNK), :] = pl.reciprocal(1.0 + jnp.exp(-y), approx=True)
        return carry

    lax.fori_loop(0, n_chunks, chunk_body, 0)


def _pack_params(w1, b1, w2, b2):
    # Single flat SMEM vector: w1[f, j] lives at f*8 + j, then b1, w2, b2.
    return jnp.concatenate([
        w1.astype(jnp.float32).reshape(-1),    # (16,)
        b1.astype(jnp.float32).reshape(-1),    # (8,)
        w2.astype(jnp.float32).reshape(-1),    # (8,)
        b2.astype(jnp.float32).reshape(-1),    # (1,)
    ])


def net_forward_fm(xT, w1, b1, w2, b2, *, max_rows_per_tile=2048):
    """Feature-major forward: xT is (2, B) f32.  Returns (B,) f32 probabilities."""
    B = xT.shape[1]

    total_rows = _round_up(max(1, pl.cdiv(B, LANES)), CHUNK)
    if total_rows >= 2 * CHUNK:
        # Aim for >= 2 grid steps so v7x's two TensorCores both get work.
        rows_per_tile = min(max_rows_per_tile,
                            _round_up(pl.cdiv(total_rows, 2), CHUNK))
    else:
        rows_per_tile = total_rows
    total_rows = _round_up(total_rows, rows_per_tile)
    n_tiles = total_rows // rows_per_tile
    Bp = total_rows * LANES

    xT = jnp.pad(xT.astype(jnp.float32), ((0, 0), (0, Bp - B)))
    x3 = xT.reshape(N_IN, total_rows, LANES)        # contiguous (free) reshape

    params = _pack_params(w1, b1, w2, b2)

    out = pl.pallas_call(
        mlp_kernel,
        out_shape=jax.ShapeDtypeStruct((total_rows, LANES), jnp.float32),
        grid=(n_tiles,),
        in_specs=[
            pl.BlockSpec(memory_space=pltpu.MemorySpace.SMEM),                # params
            pl.BlockSpec((N_IN, rows_per_tile, LANES), lambda i: (0, i, 0)),  # x slab
        ],
        out_specs=pl.BlockSpec((rows_per_tile, LANES), lambda i: (i, 0)),     # dense out
        compiler_params=pltpu.CompilerParams(
            dimension_semantics=("parallel",)),
    )(params, x3)

    return out.reshape(Bp)[:B]


def net_forward(x, w1, b1, w2, b2, *, max_rows_per_tile=2048):
    """PyTorch-layout forward: x is (B, 2).  Returns (B, 1).

    The (B,2)->(2,B) relayout lives here only; feed net_forward_fm directly with a
    feature-major (2, B) array (or fuse the transpose into x's producer) to skip it.
    """
    B = x.shape[0]
    xT = x.astype(jnp.float32).T                    # (2, B)
    y = net_forward_fm(xT, w1, b1, w2, b2, max_rows_per_tile=max_rows_per_tile)
    return y.reshape(B, 1)


def init_params(key):
    # Mimics PyTorch default nn.Linear init: U(-1/sqrt(fan_in), 1/sqrt(fan_in)).
    k1, k2, k3, k4 = jax.random.split(key, 4)
    bound1 = 1.0 / jnp.sqrt(2.0)
    bound2 = 1.0 / jnp.sqrt(8.0)
    w1 = jax.random.uniform(k1, (2, 8), jnp.float32, -bound1, bound1)   # fc1 weight^T
    b1 = jax.random.uniform(k2, (8,), jnp.float32, -bound1, bound1)     # fc1 bias
    w2 = jax.random.uniform(k3, (8, 1), jnp.float32, -bound2, bound2)   # fc2 weight^T
    b2 = jax.random.uniform(k4, (1,), jnp.float32, -bound2, bound2)     # fc2 bias
    return w1, b1, w2, b2


def _reference(x, w1, b1, w2, b2):
    # Plain-JAX reference (same math as the PyTorch module).
    return jax.nn.sigmoid(jnp.maximum(x @ w1 + b1, 0.0) @ w2 + b2)


if __name__ == "__main__":
    key = jax.random.PRNGKey(0)
    k_x1, k_x2, k_p = jax.random.split(key, 3)
    w1, b1, w2, b2 = init_params(k_p)

    # Small, unaligned batch (exercises padding + single-tile path).
    B1 = 300
    x1 = jax.random.normal(k_x1, (B1, N_IN), jnp.float32)
    out1 = jax.block_until_ready(net_forward(x1, w1, b1, w2, b2))
    ref1 = _reference(x1, w1, b1, w2, b2)
    assert out1.shape == (B1, 1)
    assert jnp.allclose(out1, ref1, atol=1e-3, rtol=1e-3), \
        float(jnp.max(jnp.abs(out1 - ref1)))

    # Larger batch (exercises the multi-tile 'parallel' grid path).
    B2 = 10000
    x2 = jax.random.normal(k_x2, (B2, N_IN), jnp.float32)
    out2 = jax.block_until_ready(net_forward(x2, w1, b1, w2, b2))
    ref2 = _reference(x2, w1, b1, w2, b2)
    assert out2.shape == (B2, 1)
    assert jnp.allclose(out2, ref2, atol=1e-3, rtol=1e-3), \
        float(jnp.max(jnp.abs(out2 - ref2)))

    print("KERNEL_OK")
</pallas_src>

<mosaic_0001>
module attributes {stable_mosaic.version = 11 : i64} {
  func.func @mlp_kernel(%arg0: i32, %arg1: memref<33xf32, #tpu.memory_space<smem>>, %arg2: memref<2x32x128xf32, #tpu.memory_space<vmem>>, %arg3: memref<32x128xf32, #tpu.memory_space<vmem>>) attributes {dimension_semantics = [#tpu.dimension_semantics<parallel>], iteration_bounds = array<i64: 1>, scalar_prefetch = 0 : i64, scratch_operands = 0 : i64, tpu.core_type = #tpu.core_type<tc>, window_params = [{transform_indices = @transform_0, window_bounds = array<i64: 33>}, {transform_indices = @transform_1, window_bounds = array<i64: 2, 32, 128>}, {transform_indices = @transform_2, window_bounds = array<i64: 32, 128>}]} {
    %c0_i32 = arith.constant 0 : i32
    %c1_i32 = arith.constant 1 : i32
    %c0_i32_0 = arith.constant 0 : i32
    %c32_i32 = arith.constant 32 : i32
    %0 = arith.muli %c0_i32_0, %c32_i32 : i32
    %1 = tpu.assume_multiple %0, 32 : i32
    %c0_i32_1 = arith.constant 0 : i32
    %c0_i32_2 = arith.constant 0 : i32
    %2 = tpu.memref_slice %arg2[%c0_i32, %c0_i32_1, %c0_i32_2] : memref<2x32x128xf32, #tpu.memory_space<vmem>> -> memref<1x32x128xf32, #tpu.memory_space<vmem>>
    %3 = tpu.memref_squeeze %2 : memref<1x32x128xf32, #tpu.memory_space<vmem>> -> memref<32x128xf32, #tpu.memory_space<vmem>>
    %4 = arith.index_cast %1 : i32 to index
    %c0 = arith.constant 0 : index
    %5 = vector.load %3[%4, %c0] : memref<32x128xf32, #tpu.memory_space<vmem>>, vector<32x128xf32>
    %c0_i32_3 = arith.constant 0 : i32
    %c0_i32_4 = arith.constant 0 : i32
    %6 = tpu.memref_slice %arg2[%c1_i32, %c0_i32_3, %c0_i32_4] : memref<2x32x128xf32, #tpu.memory_space<vmem>> -> memref<1x32x128xf32, #tpu.memory_space<vmem>>
    %7 = tpu.memref_squeeze %6 : memref<1x32x128xf32, #tpu.memory_space<vmem>> -> memref<32x128xf32, #tpu.memory_space<vmem>>
    %8 = arith.index_cast %1 : i32 to index
    %c0_5 = arith.constant 0 : index
    %9 = vector.load %7[%8, %c0_5] : memref<32x128xf32, #tpu.memory_space<vmem>>, vector<32x128xf32>
    %cst = arith.constant 0.000000e+00 : f32
    %10 = vector.broadcast %cst : f32 to vector<32x128xf32>
    %c0_6 = arith.constant 0 : index
    %11 = memref.load %arg1[%c0_6] : memref<33xf32, #tpu.memory_space<smem>>
    %12 = vector.broadcast %11 : f32 to vector<32x128xf32>
    %13 = arith.mulf %12, %5 : vector<32x128xf32>
    %c8 = arith.constant 8 : index
    %14 = memref.load %arg1[%c8] : memref<33xf32, #tpu.memory_space<smem>>
    %15 = vector.broadcast %14 : f32 to vector<32x128xf32>
    %16 = arith.mulf %15, %9 : vector<32x128xf32>
    %17 = arith.addf %13, %16 : vector<32x128xf32>
    %c16 = arith.constant 16 : index
    %18 = memref.load %arg1[%c16] : memref<33xf32, #tpu.memory_space<smem>>
    %19 = vector.broadcast %18 : f32 to vector<32x128xf32>
    %20 = arith.addf %17, %19 : vector<32x128xf32>
    %cst_7 = arith.constant 0.000000e+00 : f32
    %21 = vector.broadcast %cst_7 : f32 to vector<32x128xf32>
    %22 = arith.maximumf %20, %21 : vector<32x128xf32>
    %c24 = arith.constant 24 : index
    %23 = memref.load %arg1[%c24] : memref<33xf32, #tpu.memory_space<smem>>
    %24 = vector.broadcast %23 : f32 to vector<32x128xf32>
    %25 = arith.mulf %24, %22 : vector<32x128xf32>
    %26 = arith.addf %10, %25 : vector<32x128xf32>
    %c1 = arith.constant 1 : index
    %27 = memref.load %arg1[%c1] : memref<33xf32, #tpu.memory_space<smem>>
    %28 = vector.broadcast %27 : f32 to vector<32x128xf32>
    %29 = arith.mulf %28, %5 : vector<32x128xf32>
    %c9 = arith.constant 9 : index
    %30 = memref.load %arg1[%c9] : memref<33xf32, #tpu.memory_space<smem>>
    %31 = vector.broadcast %30 : f32 to vector<32x128xf32>
    %32 = arith.mulf %31, %9 : vector<32x128xf32>
    %33 = arith.addf %29, %32 : vector<32x128xf32>
    %c17 = arith.constant 17 : index
    %34 = memref.load %arg1[%c17] : memref<33xf32, #tpu.memory_space<smem>>
    %35 = vector.broadcast %34 : f32 to vector<32x128xf32>
    %36 = arith.addf %33, %35 : vector<32x128xf32>
    %cst_8 = arith.constant 0.000000e+00 : f32
    %37 = vector.broadcast %cst_8 : f32 to vector<32x128xf32>
    %38 = arith.maximumf %36, %37 : vector<32x128xf32>
    %c25 = arith.constant 25 : index
    %39 = memref.load %arg1[%c25] : memref<33xf32, #tpu.memory_space<smem>>
    %40 = vector.broadcast %39 : f32 to vector<32x128xf32>
    %41 = arith.mulf %40, %38 : vector<32x128xf32>
    %42 = arith.addf %26, %41 : vector<32x128xf32>
    %c2 = arith.constant 2 : index
    %43 = memref.load %arg1[%c2] : memref<33xf32, #tpu.memory_space<smem>>
    %44 = vector.broadcast %43 : f32 to vector<32x128xf32>
    %45 = arith.mulf %44, %5 : vector<32x128xf32>
    %c10 = arith.constant 10 : index
    %46 = memref.load %arg1[%c10] : memref<33xf32, #tpu.memory_space<smem>>
    %47 = vector.broadcast %46 : f32 to vector<32x128xf32>
    %48 = arith.mulf %47, %9 : vector<32x128xf32>
    %49 = arith.addf %45, %48 : vector<32x128xf32>
    %c18 = arith.constant 18 : index
    %50 = memref.load %arg1[%c18] : memref<33xf32, #tpu.memory_space<smem>>
    %51 = vector.broadcast %50 : f32 to vector<32x128xf32>
    %52 = arith.addf %49, %51 : vector<32x128xf32>
    %cst_9 = arith.constant 0.000000e+00 : f32
    %53 = vector.broadcast %cst_9 : f32 to vector<32x128xf32>
    %54 = arith.maximumf %52, %53 : vector<32x128xf32>
    %c26 = arith.constant 26 : index
    %55 = memref.load %arg1[%c26] : memref<33xf32, #tpu.memory_space<smem>>
    %56 = vector.broadcast %55 : f32 to vector<32x128xf32>
    %57 = arith.mulf %56, %54 : vector<32x128xf32>
    %58 = arith.addf %42, %57 : vector<32x128xf32>
    %c3 = arith.constant 3 : index
    %59 = memref.load %arg1[%c3] : memref<33xf32, #tpu.memory_space<smem>>
    %60 = vector.broadcast %59 : f32 to vector<32x128xf32>
    %61 = arith.mulf %60, %5 : vector<32x128xf32>
    %c11 = arith.constant 11 : index
    %62 = memref.load %arg1[%c11] : memref<33xf32, #tpu.memory_space<smem>>
    %63 = vector.broadcast %62 : f32 to vector<32x128xf32>
    %64 = arith.mulf %63, %9 : vector<32x128xf32>
    %65 = arith.addf %61, %64 : vector<32x128xf32>
    %c19 = arith.constant 19 : index
    %66 = memref.load %arg1[%c19] : memref<33xf32, #tpu.memory_space<smem>>
    %67 = vector.broadcast %66 : f32 to vector<32x128xf32>
    %68 = arith.addf %65, %67 : vector<32x128xf32>
    %cst_10 = arith.constant 0.000000e+00 : f32
    %69 = vector.broadcast %cst_10 : f32 to vector<32x128xf32>
    %70 = arith.maximumf %68, %69 : vector<32x128xf32>
    %c27 = arith.constant 27 : index
    %71 = memref.load %arg1[%c27] : memref<33xf32, #tpu.memory_space<smem>>
    %72 = vector.broadcast %71 : f32 to vector<32x128xf32>
    %73 = arith.mulf %72, %70 : vector<32x128xf32>
    %74 = arith.addf %58, %73 : vector<32x128xf32>
    %c4 = arith.constant 4 : index
    %75 = memref.load %arg1[%c4] : memref<33xf32, #tpu.memory_space<smem>>
    %76 = vector.broadcast %75 : f32 to vector<32x128xf32>
    %77 = arith.mulf %76, %5 : vector<32x128xf32>
    %c12 = arith.constant 12 : index
    %78 = memref.load %arg1[%c12] : memref<33xf32, #tpu.memory_space<smem>>
    %79 = vector.broadcast %78 : f32 to vector<32x128xf32>
    %80 = arith.mulf %79, %9 : vector<32x128xf32>
    %81 = arith.addf %77, %80 : vector<32x128xf32>
    %c20 = arith.constant 20 : index
    %82 = memref.load %arg1[%c20] : memref<33xf32, #tpu.memory_space<smem>>
    %83 = vector.broadcast %82 : f32 to vector<32x128xf32>
    %84 = arith.addf %81, %83 : vector<32x128xf32>
    %cst_11 = arith.constant 0.000000e+00 : f32
    %85 = vector.broadcast %cst_11 : f32 to vector<32x128xf32>
    %86 = arith.maximumf %84, %85 : vector<32x128xf32>
    %c28 = arith.constant 28 : index
    %87 = memref.load %arg1[%c28] : memref<33xf32, #tpu.memory_space<smem>>
    %88 = vector.broadcast %87 : f32 to vector<32x128xf32>
    %89 = arith.mulf %88, %86 : vector<32x128xf32>
    %90 = arith.addf %74, %89 : vector<32x128xf32>
    %c5 = arith.constant 5 : index
    %91 = memref.load %arg1[%c5] : memref<33xf32, #tpu.memory_space<smem>>
    %92 = vector.broadcast %91 : f32 to vector<32x128xf32>
    %93 = arith.mulf %92, %5 : vector<32x128xf32>
    %c13 = arith.constant 13 : index
    %94 = memref.load %arg1[%c13] : memref<33xf32, #tpu.memory_space<smem>>
    %95 = vector.broadcast %94 : f32 to vector<32x128xf32>
    %96 = arith.mulf %95, %9 : vector<32x128xf32>
    %97 = arith.addf %93, %96 : vector<32x128xf32>
    %c21 = arith.constant 21 : index
    %98 = memref.load %arg1[%c21] : memref<33xf32, #tpu.memory_space<smem>>
    %99 = vector.broadcast %98 : f32 to vector<32x128xf32>
    %100 = arith.addf %97, %99 : vector<32x128xf32>
    %cst_12 = arith.constant 0.000000e+00 : f32
    %101 = vector.broadcast %cst_12 : f32 to vector<32x128xf32>
    %102 = arith.maximumf %100, %101 : vector<32x128xf32>
    %c29 = arith.constant 29 : index
    %103 = memref.load %arg1[%c29] : memref<33xf32, #tpu.memory_space<smem>>
    %104 = vector.broadcast %103 : f32 to vector<32x128xf32>
    %105 = arith.mulf %104, %102 : vector<32x128xf32>
    %106 = arith.addf %90, %105 : vector<32x128xf32>
    %c6 = arith.constant 6 : index
    %107 = memref.load %arg1[%c6] : memref<33xf32, #tpu.memory_space<smem>>
    %108 = vector.broadcast %107 : f32 to vector<32x128xf32>
    %109 = arith.mulf %108, %5 : vector<32x128xf32>
    %c14 = arith.constant 14 : index
    %110 = memref.load %arg1[%c14] : memref<33xf32, #tpu.memory_space<smem>>
    %111 = vector.broadcast %110 : f32 to vector<32x128xf32>
    %112 = arith.mulf %111, %9 : vector<32x128xf32>
    %113 = arith.addf %109, %112 : vector<32x128xf32>
    %c22 = arith.constant 22 : index
    %114 = memref.load %arg1[%c22] : memref<33xf32, #tpu.memory_space<smem>>
    %115 = vector.broadcast %114 : f32 to vector<32x128xf32>
    %116 = arith.addf %113, %115 : vector<32x128xf32>
    %cst_13 = arith.constant 0.000000e+00 : f32
    %117 = vector.broadcast %cst_13 : f32 to vector<32x128xf32>
    %118 = arith.maximumf %116, %117 : vector<32x128xf32>
    %c30 = arith.constant 30 : index
    %119 = memref.load %arg1[%c30] : memref<33xf32, #tpu.memory_space<smem>>
    %120 = vector.broadcast %119 : f32 to vector<32x128xf32>
    %121 = arith.mulf %120, %118 : vector<32x128xf32>
    %122 = arith.addf %106, %121 : vector<32x128xf32>
    %c7 = arith.constant 7 : index
    %123 = memref.load %arg1[%c7] : memref<33xf32, #tpu.memory_space<smem>>
    %124 = vector.broadcast %123 : f32 to vector<32x128xf32>
    %125 = arith.mulf %124, %5 : vector<32x128xf32>
    %c15 = arith.constant 15 : index
    %126 = memref.load %arg1[%c15] : memref<33xf32, #tpu.memory_space<smem>>
    %127 = vector.broadcast %126 : f32 to vector<32x128xf32>
    %128 = arith.mulf %127, %9 : vector<32x128xf32>
    %129 = arith.addf %125, %128 : vector<32x128xf32>
    %c23 = arith.constant 23 : index
    %130 = memref.load %arg1[%c23] : memref<33xf32, #tpu.memory_space<smem>>
    %131 = vector.broadcast %130 : f32 to vector<32x128xf32>
    %132 = arith.addf %129, %131 : vector<32x128xf32>
    %cst_14 = arith.constant 0.000000e+00 : f32
    %133 = vector.broadcast %cst_14 : f32 to vector<32x128xf32>
    %134 = arith.maximumf %132, %133 : vector<32x128xf32>
    %c31 = arith.constant 31 : index
    %135 = memref.load %arg1[%c31] : memref<33xf32, #tpu.memory_space<smem>>
    %136 = vector.broadcast %135 : f32 to vector<32x128xf32>
    %137 = arith.mulf %136, %134 : vector<32x128xf32>
    %138 = arith.addf %122, %137 : vector<32x128xf32>
    %c32 = arith.constant 32 : index
    %139 = memref.load %arg1[%c32] : memref<33xf32, #tpu.memory_space<smem>>
    %140 = vector.broadcast %139 : f32 to vector<32x128xf32>
    %141 = arith.addf %138, %140 : vector<32x128xf32>
    %cst_15 = arith.constant 0.000000e+00 : f32
    %142 = vector.broadcast %cst_15 : f32 to vector<32x128xf32>
    %143 = arith.subf %142, %141 : vector<32x128xf32>
    %144 = math.exp %143 : vector<32x128xf32>
    %cst_16 = arith.constant 1.000000e+00 : f32
    %145 = vector.broadcast %cst_16 : f32 to vector<32x128xf32>
    %146 = arith.addf %145, %144 : vector<32x128xf32>
    %147 = tpu.reciprocal %146 {approx = true} : vector<32x128xf32> -> vector<32x128xf32>
    %148 = arith.index_cast %1 : i32 to index
    %c0_17 = arith.constant 0 : index
    %149 = vector.load %arg3[%148, %c0_17] : memref<32x128xf32, #tpu.memory_space<vmem>>, vector<32x128xf32>
    tpu.vector_store %arg3[%148, %c0_17], %147 {strides = array<i32>} : memref<32x128xf32, #tpu.memory_space<vmem>>, vector<32x128xf32>,
    %c1_i32_18 = arith.constant 1 : i32
    return
  }
  func.func @transform_0(%arg0: i32) -> i32 {
    %c0_i32 = arith.constant 0 : i32
    %c0_i32_0 = arith.constant 0 : i32
    return %c0_i32 : i32
  }
  func.func @transform_1(%arg0: i32) -> (i32, i32, i32) {
    %c0_i32 = arith.constant 0 : i32
    %c0_i32_0 = arith.constant 0 : i32
    %c0_i32_1 = arith.constant 0 : i32
    return %c0_i32, %arg0, %c0_i32_0 : i32, i32, i32
  }
  func.func @transform_2(%arg0: i32) -> (i32, i32) {
    %c0_i32 = arith.constant 0 : i32
    %c0_i32_0 = arith.constant 0 : i32
    return %arg0, %c0_i32 : i32, i32
  }
}

</mosaic_0001>

<llo_original>
// kernel: tpu_custom_call.1
$region0: #{tpu_custom_call.1}
  #allocation0 [shape = 'u32[]', space=smem, size = 0x4, offset = 0x4, fixed_abs, tag = 'smem constant byte address 0x4 - core index']
  #allocation1 [shape = 'u32[72,128]{1,0:T(1,128)}', space=vmem, size = 0x9000, scoped, tag = 'internal scratch']
  %s0 = inlined_call_operand.hbm [shape: f32[33], index: 0, kind: input, shape index: {}]
  %s1 = inlined_call_operand.hbm [shape: f32[2,32,128], index: 1, kind: input, shape index: {}]
  %s2 = inlined_call_operand.hbm [shape: f32[32,128], index: 2, kind: output, shape index: {}]
  %s3 = sld [smem:[#allocation0]]
  $region26: #{tpu_custom_call.1} parent=0
    _
  %s5 = ssub.s32 1, %s3
  %s6 = scalar_select 0, %s5, %s3
  $region1: #{tpu_custom_call.1} parent=0
    #allocation2 [shape = 'u8[512]{0}', space=smem, size = 0x200, scoped, tag = 'input window, operand 0, single buffered']
    #allocation3 [shape = 's32[1]{0}', space=sflag, size = 0x4, scoped, tag = 'scoped memory for tpu_custom_call.1']
    #allocation4 [shape = 's32[1]{0}', space=sflag, size = 0x4, scoped, tag = 'scoped memory for tpu_custom_call.1']
    #allocation5 [shape = 's32[1]{0}', space=sflag, size = 0x4, scoped, tag = 'scoped memory for tpu_custom_call.1']
    #allocation6 [shape = 'u8[32768]{0}', space=vmem, size = 0x8000, scoped, tag = 'input window, operand 1, single buffered']
    #allocation7 [shape = 'u8[16384]{0}', space=vmem, size = 0x4000, scoped, tag = 'output window, operand 0, single buffered']
    %7 = vsyncpa [#allocation5], 0
    %8 = vsyncpa [#allocation3], 0
    %9 = vsyncpa [#allocation4], 0
    // Predicated region
    $region2: #{tpu_custom_call.1} parent=1 // pred_check
      _
    $region3: #{tpu_custom_call.1} parent=1 // pred_check_branch
      %11 = sbr.rel (0) target = $region5
    $region4: #{tpu_custom_call.1} parent=1 // pred_region
      %13 = vsyncadd [#allocation5], 0
      %s15 = sshll.u32 %s0, 4
      %s16 = int_to_ptr.hbm [resolvable:$true] %s15
      %18 = dma.hbm_to_smem %s16, 16, [#allocation2], [#allocation5]
    $region5: #{tpu_custom_call.1} parent=1 // pred_fallthru
      _
    // Predicated region
    $region6: #{tpu_custom_call.1} parent=1 // pred_check
      _
    $region7: #{tpu_custom_call.1} parent=1 // pred_check_branch
      %20 = sbr.rel (0) target = $region9
    $region8: #{tpu_custom_call.1} parent=1 // pred_region
      %22 = vsyncadd [#allocation3], 0
      %s23 = sshll.u32 %s1, 4
      %s24 = int_to_ptr.hbm [resolvable:$true] %s23
      %s25 = sshll.u32 [#allocation6], 4
      %s26 = int_to_ptr.vmem [resolvable:$true] %s25
      %31 = dma.hbm_to_vmem [thread:$0]  %s24, 1024, %s26, [#allocation3], 128, 128, 8
    $region9: #{tpu_custom_call.1} parent=1 // pred_fallthru
      _
    // Predicated region
    $region10: #{tpu_custom_call.1} parent=1 // pred_check
      _
    $region11: #{tpu_custom_call.1} parent=1 // pred_check_branch
      %33 = sbr.rel (0) target = $region13
    $region12: #{tpu_custom_call.1} parent=1 // pred_region
      %35 = dma.done [#allocation5], 16
    $region13: #{tpu_custom_call.1} parent=1 // pred_fallthru
      _
    // Predicated region
    $region14: #{tpu_custom_call.1} parent=1 // pred_check
      _
    $region15: #{tpu_custom_call.1} parent=1 // pred_check_branch
      %37 = sbr.rel (0) target = $region17
    $region16: #{tpu_custom_call.1} parent=1 // pred_region
      %39 = dma.done [#allocation3], 1024
    $region17: #{tpu_custom_call.1} parent=1 // pred_fallthru
      _
    %40 = sfence
    %v41 = vld [vmem:[#allocation6] sm:$0xff]
    %v42 = vld [vmem:[#allocation6 + $0x8] sm:$0xff]
    %v43 = vld [vmem:[#allocation6 + $0x10] sm:$0xff]
    %v44 = vld [vmem:[#allocation6 + $0x18] sm:$0xff]
    %s45 = scalar_lea.vmem [#allocation6], 32
    %v46 = vld [vmem:[%s45] sm:$0xff]
    %v47 = vld [vmem:[%s45 + $0x8] sm:$0xff]
    %v48 = vld [vmem:[%s45 + $0x10] sm:$0xff]
    %v49 = vld [vmem:[%s45 + $0x18] sm:$0xff]
    %s50 = sld [smem:[#allocation2]]
    %v51 = vstv %s50
    %v52 = vmul.f32 %v51, %v41
    %v53 = vmul.f32 %v51, %v42
    %v54 = vmul.f32 %v51, %v43
    %v55 = vmul.f32 %v51, %v44
    %s56 = sld [smem:[#allocation2 + $0x8]]
    %v57 = vstv %s56
    %v58 = vmul.f32 %v57, %v46
    %v59 = vmul.f32 %v57, %v47
    %v60 = vmul.f32 %v57, %v48
    %v61 = vmul.f32 %v57, %v49
    %v62 = vadd.f32 %v52, %v58
    %v63 = vadd.f32 %v53, %v59
    %v64 = vadd.f32 %v54, %v60
    %v65 = vadd.f32 %v55, %v61
    %s66 = sld [smem:[#allocation2 + $0x10]]
    %v67 = vstv %s66
    %v68 = vadd.f32 %v62, %v67
    %v69 = vadd.f32 %v63, %v67
    %v70 = vadd.f32 %v64, %v67
    %v71 = vadd.f32 %v65, %v67
    %v72 = vmax.f32 %v68, 0.0
    %v73 = vmax.f32 %v69, 0.0
    %v74 = vmax.f32 %v70, 0.0
    %v75 = vmax.f32 %v71, 0.0
    %s76 = sld [smem:[#allocation2 + $0x18]]
    %v77 = vstv %s76
    %v78 = vmul.f32 %v77, %v72
    %v79 = vmul.f32 %v77, %v73
    %v80 = vmul.f32 %v77, %v74
    %v81 = vmul.f32 %v77, %v75
    %v82 = vadd.f32 %v78, 0.0
    %v83 = vadd.f32 %v79, 0.0
    %v84 = vadd.f32 %v80, 0.0
    %v85 = vadd.f32 %v81, 0.0
    %s86 = sld [smem:[#allocation2 + $0x1]]
    %v87 = vstv %s86
    %v88 = vmul.f32 %v87, %v41
    %v89 = vmul.f32 %v87, %v42
    %v90 = vmul.f32 %v87, %v43
    %v91 = vmul.f32 %v87, %v44
    %s92 = sld [smem:[#allocation2 + $0x9]]
    %v93 = vstv %s92
    %v94 = vmul.f32 %v93, %v46
    %v95 = vmul.f32 %v93, %v47
    %v96 = vmul.f32 %v93, %v48
    %v97 = vmul.f32 %v93, %v49
    %v98 = vadd.f32 %v88, %v94
    %v99 = vadd.f32 %v89, %v95
    %v100 = vadd.f32 %v90, %v96
    %v101 = vadd.f32 %v91, %v97
    %s102 = sld [smem:[#allocation2 + $0x11]]
    %v103 = vstv %s102
    %v104 = vadd.f32 %v98, %v103
    %v105 = vadd.f32 %v99, %v103
    %v106 = vadd.f32 %v100, %v103
    %v107 = vadd.f32 %v101, %v103
    %v108 = vmax.f32 %v104, 0.0
    %v109 = vmax.f32 %v105, 0.0
    %v110 = vmax.f32 %v106, 0.0
    %v111 = vmax.f32 %v107, 0.0
    %s112 = sld [smem:[#allocation2 + $0x19]]
    %v113 = vstv %s112
    %v114 = vmul.f32 %v113, %v108
    %v115 = vmul.f32 %v113, %v109
    %v116 = vmul.f32 %v113, %v110
    %v117 = vmul.f32 %v113, %v111
    %v118 = vadd.f32 %v82, %v114
    %v119 = vadd.f32 %v83, %v115
    %v120 = vadd.f32 %v84, %v116
    %v121 = vadd.f32 %v85, %v117
    %s122 = sld [smem:[#allocation2 + $0x2]]
    %v123 = vstv %s122
    %v124 = vmul.f32 %v123, %v41
    %v125 = vmul.f32 %v123, %v42
    %v126 = vmul.f32 %v123, %v43
    %v127 = vmul.f32 %v123, %v44
    %s128 = sld [smem:[#allocation2 + $0xa]]
    %v129 = vstv %s128
    %v130 = vmul.f32 %v129, %v46
    %v131 = vmul.f32 %v129, %v47
    %v132 = vmul.f32 %v129, %v48
    %v133 = vmul.f32 %v129, %v49
    %v134 = vadd.f32 %v124, %v130
    %v135 = vadd.f32 %v125, %v131
    %v136 = vadd.f32 %v126, %v132
    %v137 = vadd.f32 %v127, %v133
    %s138 = sld [smem:[#allocation2 + $0x12]]
    %v139 = vstv %s138
    %v140 = vadd.f32 %v134, %v139
    %v141 = vadd.f32 %v135, %v139
    %v142 = vadd.f32 %v136, %v139
    %v143 = vadd.f32 %v137, %v139
    %v144 = vmax.f32 %v140, 0.0
    %v145 = vmax.f32 %v141, 0.0
    %v146 = vmax.f32 %v142, 0.0
    %v147 = vmax.f32 %v143, 0.0
    %s148 = sld [smem:[#allocation2 + $0x1a]]
    %v149 = vstv %s148
    %v150 = vmul.f32 %v149, %v144
    %v151 = vmul.f32 %v149, %v145
    %v152 = vmul.f32 %v149, %v146
    %v153 = vmul.f32 %v149, %v147
    %v154 = vadd.f32 %v118, %v150
    %v155 = vadd.f32 %v119, %v151
    %v156 = vadd.f32 %v120, %v152
    %v157 = vadd.f32 %v121, %v153
    %s158 = sld [smem:[#allocation2 + $0x3]]
    %v159 = vstv %s158
    %v160 = vmul.f32 %v159, %v41
    %v161 = vmul.f32 %v159, %v42
    %v162 = vmul.f32 %v159, %v43
    %v163 = vmul.f32 %v159, %v44
    %s164 = sld [smem:[#allocation2 + $0xb]]
    %v165 = vstv %s164
    %v166 = vmul.f32 %v165, %v46
    %v167 = vmul.f32 %v165, %v47
    %v168 = vmul.f32 %v165, %v48
    %v169 = vmul.f32 %v165, %v49
    %v170 = vadd.f32 %v160, %v166
    %v171 = vadd.f32 %v161, %v167
    %v172 = vadd.f32 %v162, %v168
    %v173 = vadd.f32 %v163, %v169
    %s174 = sld [smem:[#allocation2 + $0x13]]
    %v175 = vstv %s174
    %v176 = vadd.f32 %v170, %v175
    %v177 = vadd.f32 %v171, %v175
    %v178 = vadd.f32 %v172, %v175
    %v179 = vadd.f32 %v173, %v175
    %v180 = vmax.f32 %v176, 0.0
    %v181 = vmax.f32 %v177, 0.0
    %v182 = vmax.f32 %v178, 0.0
    %v183 = vmax.f32 %v179, 0.0
    %s184 = sld [smem:[#allocation2 + $0x1b]]
    %v185 = vstv %s184
    %v186 = vmul.f32 %v185, %v180
    %v187 = vmul.f32 %v185, %v181
    %v188 = vmul.f32 %v185, %v182
    %v189 = vmul.f32 %v185, %v183
    %v190 = vadd.f32 %v154, %v186
    %v191 = vadd.f32 %v155, %v187
    %v192 = vadd.f32 %v156, %v188
    %v193 = vadd.f32 %v157, %v189
    %s194 = sld [smem:[#allocation2 + $0x4]]
    %v195 = vstv %s194
    %v196 = vmul.f32 %v195, %v41
    %v197 = vmul.f32 %v195, %v42
    %v198 = vmul.f32 %v195, %v43
    %v199 = vmul.f32 %v195, %v44
    %s200 = sld [smem:[#allocation2 + $0xc]]
    %v201 = vstv %s200
    %v202 = vmul.f32 %v201, %v46
    %v203 = vmul.f32 %v201, %v47
    %v204 = vmul.f32 %v201, %v48
    %v205 = vmul.f32 %v201, %v49
    %v206 = vadd.f32 %v196, %v202
    %v207 = vadd.f32 %v197, %v203
    %v208 = vadd.f32 %v198, %v204
    %v209 = vadd.f32 %v199, %v205
    %s210 = sld [smem:[#allocation2 + $0x14]]
    %v211 = vstv %s210
    %v212 = vadd.f32 %v206, %v211
    %v213 = vadd.f32 %v207, %v211
    %v214 = vadd.f32 %v208, %v211
    %v215 = vadd.f32 %v209, %v211
    %v216 = vmax.f32 %v212, 0.0
    %v217 = vmax.f32 %v213, 0.0
    %v218 = vmax.f32 %v214, 0.0
    %v219 = vmax.f32 %v215, 0.0
    %s220 = sld [smem:[#allocation2 + $0x1c]]
    %v221 = vstv %s220
    %v222 = vmul.f32 %v221, %v216
    %v223 = vmul.f32 %v221, %v217
    %v224 = vmul.f32 %v221, %v218
    %v225 = vmul.f32 %v221, %v219
    %v226 = vadd.f32 %v190, %v222
    %v227 = vadd.f32 %v191, %v223
    %v228 = vadd.f32 %v192, %v224
    %v229 = vadd.f32 %v193, %v225
    %s230 = sld [smem:[#allocation2 + $0x5]]
    %v231 = vstv %s230
    %v232 = vmul.f32 %v231, %v41
    %v233 = vmul.f32 %v231, %v42
    %v234 = vmul.f32 %v231, %v43
    %v235 = vmul.f32 %v231, %v44
    %s236 = sld [smem:[#allocation2 + $0xd]]
    %v237 = vstv %s236
    %v238 = vmul.f32 %v237, %v46
    %v239 = vmul.f32 %v237, %v47
    %v240 = vmul.f32 %v237, %v48
    %v241 = vmul.f32 %v237, %v49
    %v242 = vadd.f32 %v232, %v238
    %v243 = vadd.f32 %v233, %v239
    %v244 = vadd.f32 %v234, %v240
    %v245 = vadd.f32 %v235, %v241
    %s246 = sld [smem:[#allocation2 + $0x15]]
    %v247 = vstv %s246
    %v248 = vadd.f32 %v242, %v247
    %v249 = vadd.f32 %v243, %v247
    %v250 = vadd.f32 %v244, %v247
    %v251 = vadd.f32 %v245, %v247
    %v252 = vmax.f32 %v248, 0.0
    %v253 = vmax.f32 %v249, 0.0
    %v254 = vmax.f32 %v250, 0.0
    %v255 = vmax.f32 %v251, 0.0
    %s256 = sld [smem:[#allocation2 + $0x1d]]
    %v257 = vstv %s256
    %v258 = vmul.f32 %v257, %v252
    %v259 = vmul.f32 %v257, %v253
    %v260 = vmul.f32 %v257, %v254
    %v261 = vmul.f32 %v257, %v255
    %v262 = vadd.f32 %v226, %v258
    %v263 = vadd.f32 %v227, %v259
    %v264 = vadd.f32 %v228, %v260
    %v265 = vadd.f32 %v229, %v261
    %s266 = sld [smem:[#allocation2 + $0x6]]
    %v267 = vstv %s266
    %v268 = vmul.f32 %v267, %v41
    %v269 = vmul.f32 %v267, %v42
    %v270 = vmul.f32 %v267, %v43
    %v271 = vmul.f32 %v267, %v44
    %s272 = sld [smem:[#allocation2 + $0xe]]
    %v273 = vstv %s272
    %v274 = vmul.f32 %v273, %v46
    %v275 = vmul.f32 %v273, %v47
    %v276 = vmul.f32 %v273, %v48
    %v277 = vmul.f32 %v273, %v49
    %v278 = vadd.f32 %v268, %v274
    %v279 = vadd.f32 %v269, %v275
    %v280 = vadd.f32 %v270, %v276
    %v281 = vadd.f32 %v271, %v277
    %s282 = sld [smem:[#allocation2 + $0x16]]
    %v283 = vstv %s282
    %v284 = vadd.f32 %v278, %v283
    %v285 = vadd.f32 %v279, %v283
    %v286 = vadd.f32 %v280, %v283
    %v287 = vadd.f32 %v281, %v283
    %v288 = vmax.f32 %v284, 0.0
    %v289 = vmax.f32 %v285, 0.0
    %v290 = vmax.f32 %v286, 0.0
    %v291 = vmax.f32 %v287, 0.0
    %s292 = sld [smem:[#allocation2 + $0x1e]]
    %v293 = vstv %s292
    %v294 = vmul.f32 %v293, %v288
    %v295 = vmul.f32 %v293, %v289
    %v296 = vmul.f32 %v293, %v290
    %v297 = vmul.f32 %v293, %v291
    %v298 = vadd.f32 %v262, %v294
    %v299 = vadd.f32 %v263, %v295
    %v300 = vadd.f32 %v264, %v296
    %v301 = vadd.f32 %v265, %v297
    %s302 = sld [smem:[#allocation2 + $0x7]]
    %v303 = vstv %s302
    %v304 = vmul.f32 %v303, %v41
    %v305 = vmul.f32 %v303, %v42
    %v306 = vmul.f32 %v303, %v43
    %v307 = vmul.f32 %v303, %v44
    %s308 = sld [smem:[#allocation2 + $0xf]]
    %v309 = vstv %s308
    %v310 = vmul.f32 %v309, %v46
    %v311 = vmul.f32 %v309, %v47
    %v312 = vmul.f32 %v309, %v48
    %v313 = vmul.f32 %v309, %v49
    %v314 = vadd.f32 %v304, %v310
    %v315 = vadd.f32 %v305, %v311
    %v316 = vadd.f32 %v306, %v312
    %v317 = vadd.f32 %v307, %v313
    %s318 = sld [smem:[#allocation2 + $0x17]]
    %v319 = vstv %s318
    %v320 = vadd.f32 %v314, %v319
    %v321 = vadd.f32 %v315, %v319
    %v322 = vadd.f32 %v316, %v319
    %v323 = vadd.f32 %v317, %v319
    %v324 = vmax.f32 %v320, 0.0
    %v325 = vmax.f32 %v321, 0.0
    %v326 = vmax.f32 %v322, 0.0
    %v327 = vmax.f32 %v323, 0.0
    %s328 = sld [smem:[#allocation2 + $0x1f]]
    %v329 = vstv %s328
    %v330 = vmul.f32 %v329, %v324
    %v331 = vmul.f32 %v329, %v325
    %v332 = vmul.f32 %v329, %v326
    %v333 = vmul.f32 %v329, %v327
    %v334 = vadd.f32 %v298, %v330
    %v335 = vadd.f32 %v299, %v331
    %v336 = vadd.f32 %v300, %v332
    %v337 = vadd.f32 %v301, %v333
    %s338 = sld [smem:[#allocation2 + $0x20]]
    %v339 = vstv %s338
    %v340 = vadd.f32 %v334, %v339
    %v341 = vadd.f32 %v335, %v339
    %v342 = vadd.f32 %v336, %v339
    %v343 = vadd.f32 %v337, %v339
    %v344 = vsub.f32 0.0, %v340
    %v345 = vsub.f32 0.0, %v341
    %v346 = vsub.f32 0.0, %v342
    %v347 = vsub.f32 0.0, %v343
    %v348 = vmul.f32 %v344, 1.442695
    %v349 = vpow.pop %v348
    %v350 = vmul.f32 %v345, 1.442695
    %v351 = vpow.pop %v350
    %v352 = vmul.f32 %v346, 1.442695
    %v353 = vpow.pop %v352
    %v354 = vmul.f32 %v347, 1.442695
    %v355 = vpow.pop %v354
    %v356 = vadd.f32 %v349, 1.0
    %v357 = vadd.f32 %v351, 1.0
    %v358 = vadd.f32 %v353, 1.0
    %v359 = vadd.f32 %v355, 1.0
    %v360 = vrcp.pop %v356
    %v361 = vrcp.pop %v357
    %v362 = vrcp.pop %v358
    %v363 = vrcp.pop %v359
    %364 = vst [vmem:[#allocation7] sm:$0xff] %v360
    %365 = vst [vmem:[#allocation7 + $0x8] sm:$0xff] %v361
    %366 = vst [vmem:[#allocation7 + $0x10] sm:$0xff] %v362
    %367 = vst [vmem:[#allocation7 + $0x18] sm:$0xff] %v363
    // Predicated region
    $region18: #{tpu_custom_call.1} parent=1 // pred_check
      _
    $region19: #{tpu_custom_call.1} parent=1 // pred_check_branch
      %369 = sbr.rel (0) target = $region21
    $region20: #{tpu_custom_call.1} parent=1 // pred_region
      %371 = vsyncadd [#allocation4], 0
      %s372 = sshll.u32 [#allocation7], 4
      %s373 = int_to_ptr.vmem [resolvable:$true] %s372
      %s374 = sshll.u32 %s2, 4
      %s375 = int_to_ptr.hbm [resolvable:$true] %s374
      %380 = dma.vmem_to_hbm [thread:$0]  %s373, 512, %s375, [#allocation4], 128, 128, 8
    $region21: #{tpu_custom_call.1} parent=1 // pred_fallthru
      _
    // Predicated region
    $region22: #{tpu_custom_call.1} parent=1 // pred_check
      _
    $region23: #{tpu_custom_call.1} parent=1 // pred_check_branch
      %382 = sbr.rel (0) target = $region25
    $region24: #{tpu_custom_call.1} parent=1 // pred_region
      %384 = dma.done [#allocation4], 512
    $region25: #{tpu_custom_call.1} parent=1 // pred_fallthru
      _
    %385 = vsyncpa [#allocation3], 1
    %386 = vsyncpa [#allocation4], 1
    %387 = vsyncpa [#allocation5], 1

</llo_original>
